<compile_context>
chip_gen: v6e
topology: v6e:2x2x1
jax: 0.10.0
libtpu: 0.0.40
codegen_flags: <defaults>
</compile_context>

<pallas_src>
import jax
import jax.numpy as jnp
import numpy as np
from jax import lax
from jax.experimental import pallas as pl
from jax.experimental.pallas import tpu as pltpu


def _scatter_kernel(fb_ref, nb_ref,                     # scalar prefetch (SMEM)
                    bidx_ref, sidx_ref, valid_ref, feat_ref,   # VMEM inputs
                    out_ref,                            # VMEM output block
                    acc_ref):                           # VMEM scratch
    """One (batch, spatial-tile, pillar-chunk) grid step.

    fb_ref/nb_ref : SMEM (B,) int32 -- first pillar-chunk / #chunks per batch
    bidx_ref/sidx_ref/valid_ref : VMEM (PB, 1) int32
    feat_ref : VMEM (PB, C)
    out_ref  : VMEM (1, C, T)  -- lane-dense spatial tile, channel-major
    acc_ref  : VMEM (C, T) float32 accumulator (resident across chunk axis)
    """
    b = pl.program_id(0)
    t = pl.program_id(1)
    k = pl.program_id(2)

    @pl.when(k == 0)
    def _init():
        acc_ref[...] = jnp.zeros_like(acc_ref)

    # Skip pillar chunks that do not belong to this batch (per-batch partition
    # provided via scalar prefetch).
    @pl.when(k < nb_ref[b])
    def _accumulate():
        pb = feat_ref.shape[0]
        t_w = out_ref.shape[2]
        # column j of this tile corresponds to flat spatial index t*T + j
        cols = lax.broadcasted_iota(jnp.int32, (pb, t_w), 1) + t * t_w
        hit = ((sidx_ref[...] == cols)
               & (bidx_ref[...] == b)
               & (valid_ref[...] != 0))
        onehot = jnp.where(hit, 1.0, 0.0).astype(jnp.float32)       # (PB, T)
        # (PB, C)^T @ (PB, T) -> (C, T) on the MXU
        acc_ref[...] += lax.dot_general(
            feat_ref[...].astype(jnp.float32), onehot,
            dimension_numbers=(((0,), (0,)), ((), ())),
            preferred_element_type=jnp.float32)

    @pl.when(k == pl.num_programs(2) - 1)
    def _flush():
        out_ref[0] = acc_ref[...].astype(out_ref.dtype)


def pointpillar_scatter(pillar_features, voxel_coords, voxel_valid,
                        batch_size, grid_size):
    """JAX/Pallas equivalent of PointPillarScatter.forward.

    pillar_features : (P, C) float
    voxel_coords    : (P, 4) int32, columns = (batch_idx, z, y, x)
    voxel_valid     : (P,)   bool
    grid_size       : (nx, ny, nz) with nz == 1
    returns spatial_features : (batch_size, C*nz, ny, nx)  (NCHW)
    """
    nx, ny, nz = grid_size
    assert nz == 1
    P, C = pillar_features.shape
    S = nz * ny * nx                       # flattened spatial extent

    bidx = voxel_coords[:, 0].astype(jnp.int32)
    sidx = (voxel_coords[:, 1] * (ny * nx)
            + voxel_coords[:, 2] * nx
            + voxel_coords[:, 3]).astype(jnp.int32)
    valid = voxel_valid.astype(jnp.int32)

    # ---- partition pillars by batch; invalid pillars go to the end ----------
    sort_key = jnp.where(valid != 0, bidx, jnp.int32(batch_size))
    order = jnp.argsort(sort_key)
    feat_s = pillar_features[order]
    bidx_s = bidx[order]
    sidx_s = sidx[order]
    valid_s = valid[order]

    # ---- pillar-chunk size (bounds VMEM footprint independent of P) ---------
    PB = 512 if P >= 512 else max(8, ((P + 7) // 8) * 8)
    P_pad = ((P + PB - 1) // PB) * PB
    pad = P_pad - P
    if pad:
        feat_s = jnp.pad(feat_s, ((0, pad), (0, 0)))
        bidx_s = jnp.pad(bidx_s, (0, pad), constant_values=-1)
        sidx_s = jnp.pad(sidx_s, (0, pad))
        valid_s = jnp.pad(valid_s, (0, pad))
    num_blocks_total = P_pad // PB

    # ---- per-batch first pillar-chunk and chunk count (scalar prefetch) -----
    counts = jnp.sum(
        (bidx[None, :] == jnp.arange(batch_size, dtype=jnp.int32)[:, None])
        & (valid[None, :] != 0), axis=1).astype(jnp.int32)
    offsets = jnp.concatenate(
        [jnp.zeros((1,), jnp.int32), jnp.cumsum(counts)]).astype(jnp.int32)
    first_blk = (offsets[:-1] // PB).astype(jnp.int32)
    last_blk = (jnp.maximum(offsets[1:] - 1, 0) // PB).astype(jnp.int32)
    nblk = jnp.where(counts > 0, last_blk - first_blk + 1, 0).astype(jnp.int32)

    # ---- lane-dense spatial tile width (multiple of 128, or full extent) ----
    T = S
    for cand in (2048, 1024, 512, 256, 128):
        if S % cand == 0:
            T = cand
            break

    # 2-D coords so they broadcast against the (PB, T) iota inside the kernel
    bidx2 = bidx_s[:, None]
    sidx2 = sidx_s[:, None]
    valid2 = valid_s[:, None]

    def _chunk_map(b, t, k, fb, nb):
        # clamp so out-of-range (skipped) chunk steps never DMA out of bounds
        return (jnp.minimum(fb[b] + k, num_blocks_total - 1), 0)

    grid = (batch_size, S // T, num_blocks_total)

    canvas = pl.pallas_call(
        _scatter_kernel,
        out_shape=jax.ShapeDtypeStruct((batch_size, C, S),
                                       pillar_features.dtype),
        grid_spec=pltpu.PrefetchScalarGridSpec(
            num_scalar_prefetch=2,
            grid=grid,
            in_specs=[
                pl.BlockSpec((PB, 1), _chunk_map),   # bidx
                pl.BlockSpec((PB, 1), _chunk_map),   # sidx
                pl.BlockSpec((PB, 1), _chunk_map),   # valid
                pl.BlockSpec((PB, C), _chunk_map),   # features
            ],
            out_specs=pl.BlockSpec((1, C, T),
                                   lambda b, t, k, fb, nb: (b, 0, t)),
            scratch_shapes=[pltpu.VMEM((C, T), jnp.float32)],
        ),
        compiler_params=pltpu.CompilerParams(
            dimension_semantics=("parallel", "parallel", "arbitrary")),
    )(first_blk, nblk, bidx2, sidx2, valid2, feat_s)

    # (B, C, nz*ny*nx) -> (B, C*nz, ny, nx): pure metadata reshape (nz == 1),
    # no full-canvas transpose.
    return canvas.reshape(batch_size, C * nz, ny, nx)


if __name__ == "__main__":
    key = jax.random.PRNGKey(0)

    # small, deterministic problem consistent with the module
    batch_size = 2
    C = 8                        # model_cfg.NUM_BEV_FEATURES
    nx, ny, nz = 16, 16, 1       # grid_size
    pillars_per_batch = 12
    P = batch_size * pillars_per_batch

    k_feat, k_perm0, k_perm1, k_valid = jax.random.split(key, 4)
    pillar_features = jax.random.normal(k_feat, (P, C), dtype=jnp.float32)

    # unique spatial locations per batch element (typical for voxelized clouds)
    flat0 = jax.random.permutation(k_perm0, ny * nx)[:pillars_per_batch]
    flat1 = jax.random.permutation(k_perm1, ny * nx)[:pillars_per_batch]
    flat = jnp.concatenate([flat0, flat1]).astype(jnp.int32)
    bidx = jnp.concatenate([jnp.zeros(pillars_per_batch, jnp.int32),
                            jnp.ones(pillars_per_batch, jnp.int32)])
    zc = jnp.zeros(P, jnp.int32)
    yc = (flat // nx).astype(jnp.int32)
    xc = (flat % nx).astype(jnp.int32)
    voxel_coords = jnp.stack([bidx, zc, yc, xc], axis=1)
    voxel_valid = jax.random.bernoulli(k_valid, 0.8, (P,))

    out = pointpillar_scatter(pillar_features, voxel_coords, voxel_valid,
                              batch_size, (nx, ny, nz))
    out = jax.block_until_ready(out)

    # numpy reference: dense scatter, then view as (B, C*nz, ny, nx)
    ref = np.zeros((batch_size, C * nz, ny, nx), np.float32)
    pf = np.asarray(pillar_features)
    vc = np.asarray(voxel_coords)
    vv = np.asarray(voxel_valid)
    for i in range(P):
        if vv[i]:
            b, z, y, x = vc[i]
            ref[b, :, y, x] = pf[i]

    assert out.shape == (batch_size, C * nz, ny, nx)
    np.testing.assert_allclose(np.asarray(out), ref, atol=1e-6)
    print("KERNEL_OK")
</pallas_src>

<mosaic_0001>
module attributes {stable_mosaic.version = 11 : i64} {
  func.func @_scatter_kernel(%arg0: i32, %arg1: i32, %arg2: i32, %arg3: memref<2xi32, #tpu.memory_space<smem>>, %arg4: memref<2xi32, #tpu.memory_space<smem>>, %arg5: memref<24x1xi32, #tpu.memory_space<vmem>>, %arg6: memref<24x1xi32, #tpu.memory_space<vmem>>, %arg7: memref<24x1xi32, #tpu.memory_space<vmem>>, %arg8: memref<24x8xf32, #tpu.memory_space<vmem>>, %arg9: memref<1x8x256xf32, #tpu.memory_space<vmem>>, %arg10: memref<8x256xf32, #tpu.memory_space<vmem>>) attributes {dimension_semantics = [#tpu.dimension_semantics<parallel>, #tpu.dimension_semantics<parallel>, #tpu.dimension_semantics<arbitrary>], iteration_bounds = array<i64: 2, 1, 1>, scalar_prefetch = 2 : i64, scratch_operands = 1 : i64, tpu.core_type = #tpu.core_type<tc>, window_params = [{transform_indices = @transform_0, window_bounds = array<i64: 24, 1>}, {transform_indices = @transform_1, window_bounds = array<i64: 24, 1>}, {transform_indices = @transform_2, window_bounds = array<i64: 24, 1>}, {transform_indices = @transform_3, window_bounds = array<i64: 24, 8>}, {transform_indices = @transform_4, window_bounds = array<i64: 1, 8, 256>}]} {
    %c0_i32 = arith.constant 0 : i32
    %0 = arith.cmpi eq, %arg2, %c0_i32 : i32
    %1 = arith.extui %0 : i1 to i32
    %c0_i32_0 = arith.constant 0 : i32
    %2 = arith.cmpi ne, %1, %c0_i32_0 : i32
    scf.if %2 {
      %cst = arith.constant 0.000000e+00 : f32
      %11 = vector.broadcast %cst : f32 to vector<8x256xf32>
      %c0 = arith.constant 0 : index
      %c0_4 = arith.constant 0 : index
      %12 = vector.load %arg10[%c0, %c0_4] : memref<8x256xf32, #tpu.memory_space<vmem>>, vector<8x256xf32>
      tpu.vector_store %arg10[%c0, %c0_4], %11 {strides = array<i32>} : memref<8x256xf32, #tpu.memory_space<vmem>>, vector<8x256xf32>,
    } else {
    }
    %3 = arith.index_cast %arg0 : i32 to index
    %4 = memref.load %arg4[%3] : memref<2xi32, #tpu.memory_space<smem>>
    %5 = arith.cmpi slt, %arg2, %4 : i32
    %6 = arith.extui %5 : i1 to i32
    %c0_i32_1 = arith.constant 0 : i32
    %7 = arith.cmpi ne, %6, %c0_i32_1 : i32
    scf.if %7 {
      %11 = tpu.iota {dimensions = array<i32: 1>} : vector<24x256xi32>
      %c256_i32 = arith.constant 256 : i32
      %12 = arith.muli %arg1, %c256_i32 : i32
      %13 = vector.broadcast %12 : i32 to vector<24x256xi32>
      %14 = arith.addi %11, %13 : vector<24x256xi32>
      %c0 = arith.constant 0 : index
      %c0_4 = arith.constant 0 : index
      %15 = vector.load %arg6[%c0, %c0_4] : memref<24x1xi32, #tpu.memory_space<vmem>>, vector<24x1xi32>
      %16 = vector.broadcast %15 : vector<24x1xi32> to vector<24x256xi32>
      %17 = arith.cmpi eq, %16, %14 : vector<24x256xi32>
      %c0_5 = arith.constant 0 : index
      %c0_6 = arith.constant 0 : index
      %18 = vector.load %arg5[%c0_5, %c0_6] : memref<24x1xi32, #tpu.memory_space<vmem>>, vector<24x1xi32>
      %19 = vector.broadcast %arg0 : i32 to vector<24x1xi32>
      %20 = arith.cmpi eq, %18, %19 : vector<24x1xi32>
      %21 = vector.broadcast %20 : vector<24x1xi1> to vector<24x256xi1>
      %22 = arith.andi %17, %21 : vector<24x256xi1>
      %c0_7 = arith.constant 0 : index
      %c0_8 = arith.constant 0 : index
      %23 = vector.load %arg7[%c0_7, %c0_8] : memref<24x1xi32, #tpu.memory_space<vmem>>, vector<24x1xi32>
      %c0_i32_9 = arith.constant 0 : i32
      %24 = vector.broadcast %c0_i32_9 : i32 to vector<24x1xi32>
      %25 = arith.cmpi ne, %23, %24 : vector<24x1xi32>
      %26 = vector.broadcast %25 : vector<24x1xi1> to vector<24x256xi1>
      %27 = arith.andi %22, %26 : vector<24x256xi1>
      %cst = arith.constant 1.000000e+00 : f32
      %cst_10 = arith.constant 0.000000e+00 : f32
      %28 = vector.broadcast %cst : f32 to vector<24x256xf32>
      %29 = vector.broadcast %cst_10 : f32 to vector<24x256xf32>
      %30 = arith.select %27, %28, %29 : vector<24x256xi1>, vector<24x256xf32>
      %c0_11 = arith.constant 0 : index
      %c0_12 = arith.constant 0 : index
      %31 = vector.load %arg10[%c0_11, %c0_12] : memref<8x256xf32, #tpu.memory_space<vmem>>, vector<8x256xf32>
      %c0_13 = arith.constant 0 : index
      %c0_14 = arith.constant 0 : index
      %32 = vector.load %arg8[%c0_13, %c0_14] : memref<24x8xf32, #tpu.memory_space<vmem>>, vector<24x8xf32>
      %cst_15 = arith.constant dense<0.000000e+00> : vector<8x256xf32>
      %33 = tpu.matmul %32, %30, %cst_15 {dimension_numbers = #tpu.dot_dimension_numbers<[0], [0], [1], [1], [0, 1, 1, 1], [], []>} : vector<24x8xf32>, vector<24x256xf32>, vector<8x256xf32> -> vector<8x256xf32>
      %34 = arith.addf %31, %33 : vector<8x256xf32>
      %c0_16 = arith.constant 0 : index
      %c0_17 = arith.constant 0 : index
      %35 = vector.load %arg10[%c0_16, %c0_17] : memref<8x256xf32, #tpu.memory_space<vmem>>, vector<8x256xf32>
      tpu.vector_store %arg10[%c0_16, %c0_17], %34 {strides = array<i32>} : memref<8x256xf32, #tpu.memory_space<vmem>>, vector<8x256xf32>,
    } else {
    }
    %c0_i32_2 = arith.constant 0 : i32
    %8 = arith.cmpi eq, %arg2, %c0_i32_2 : i32
    %9 = arith.extui %8 : i1 to i32
    %c0_i32_3 = arith.constant 0 : i32
    %10 = arith.cmpi ne, %9, %c0_i32_3 : i32
    scf.if %10 {
      %c0 = arith.constant 0 : index
      %c0_4 = arith.constant 0 : index
      %11 = vector.load %arg10[%c0, %c0_4] : memref<8x256xf32, #tpu.memory_space<vmem>>, vector<8x256xf32>
      %c0_5 = arith.constant 0 : index
      %c0_6 = arith.constant 0 : index
      %c0_7 = arith.constant 0 : index
      %12 = vector.load %arg9[%c0_5, %c0_6, %c0_7] : memref<1x8x256xf32, #tpu.memory_space<vmem>>, vector<1x8x256xf32>
      %13 = vector.shape_cast %12 : vector<1x8x256xf32> to vector<8x256xf32>
      %14 = vector.shape_cast %11 : vector<8x256xf32> to vector<1x8x256xf32>
      tpu.vector_store %arg9[%c0_5, %c0_6, %c0_7], %14 {strides = array<i32>} : memref<1x8x256xf32, #tpu.memory_space<vmem>>, vector<1x8x256xf32>,
    } else {
    }
    return
  }
  func.func @transform_0(%arg0: i32, %arg1: i32, %arg2: i32, %arg3: memref<2xi32, #tpu.memory_space<smem>>, %arg4: memref<2xi32, #tpu.memory_space<smem>>) -> (i32, i32) {
    %0 = arith.index_cast %arg0 : i32 to index
    %1 = memref.load %arg3[%0] : memref<2xi32, #tpu.memory_space<smem>>
    %2 = arith.addi %1, %arg2 : i32
    %c0_i32 = arith.constant 0 : i32
    %3 = arith.minsi %2, %c0_i32 : i32
    %c0_i32_0 = arith.constant 0 : i32
    %c0_i32_1 = arith.constant 0 : i32
    return %3, %c0_i32_0 : i32, i32
  }
  func.func @transform_1(%arg0: i32, %arg1: i32, %arg2: i32, %arg3: memref<2xi32, #tpu.memory_space<smem>>, %arg4: memref<2xi32, #tpu.memory_space<smem>>) -> (i32, i32) {
    %0 = arith.index_cast %arg0 : i32 to index
    %1 = memref.load %arg3[%0] : memref<2xi32, #tpu.memory_space<smem>>
    %2 = arith.addi %1, %arg2 : i32
    %c0_i32 = arith.constant 0 : i32
    %3 = arith.minsi %2, %c0_i32 : i32
    %c0_i32_0 = arith.constant 0 : i32
    %c0_i32_1 = arith.constant 0 : i32
    return %3, %c0_i32_0 : i32, i32
  }
  func.func @transform_2(%arg0: i32, %arg1: i32, %arg2: i32, %arg3: memref<2xi32, #tpu.memory_space<smem>>, %arg4: memref<2xi32, #tpu.memory_space<smem>>) -> (i32, i32) {
    %0 = arith.index_cast %arg0 : i32 to index
    %1 = memref.load %arg3[%0] : memref<2xi32, #tpu.memory_space<smem>>
    %2 = arith.addi %1, %arg2 : i32
    %c0_i32 = arith.constant 0 : i32
    %3 = arith.minsi %2, %c0_i32 : i32
    %c0_i32_0 = arith.constant 0 : i32
    %c0_i32_1 = arith.constant 0 : i32
    return %3, %c0_i32_0 : i32, i32
  }
  func.func @transform_3(%arg0: i32, %arg1: i32, %arg2: i32, %arg3: memref<2xi32, #tpu.memory_space<smem>>, %arg4: memref<2xi32, #tpu.memory_space<smem>>) -> (i32, i32) {
    %0 = arith.index_cast %arg0 : i32 to index
    %1 = memref.load %arg3[%0] : memref<2xi32, #tpu.memory_space<smem>>
    %2 = arith.addi %1, %arg2 : i32
    %c0_i32 = arith.constant 0 : i32
    %3 = arith.minsi %2, %c0_i32 : i32
    %c0_i32_0 = arith.constant 0 : i32
    %c0_i32_1 = arith.constant 0 : i32
    return %3, %c0_i32_0 : i32, i32
  }
  func.func @transform_4(%arg0: i32, %arg1: i32, %arg2: i32, %arg3: memref<2xi32, #tpu.memory_space<smem>>, %arg4: memref<2xi32, #tpu.memory_space<smem>>) -> (i32, i32, i32) {
    %c0_i32 = arith.constant 0 : i32
    %c0_i32_0 = arith.constant 0 : i32
    return %arg0, %c0_i32, %arg1 : i32, i32, i32
  }
}

</mosaic_0001>

<llo_original>
// kernel: tpu_custom_call.1
$region0: #{tpu_custom_call.1}
  #allocation0 [shape = 'u32[]', space=smem, size = 0x4, offset = 0x4, fixed_abs, tag = 'smem constant byte address 0x4 - core index']
  #allocation1 [shape = 'u32[144,128]{1,0:T(1,128)}', space=vmem, size = 0x12000, scoped, tag = 'internal scratch']
  #allocation2 [shape = 'f32[8,256]{1,0:T(8,128)}', space=vmem, size = 0x2000, scoped, tag = 'scratch operand']
  #allocation3 [shape = 's32[1]{0}', space=sflag, size = 0x4, scoped, tag = 'scoped memory for tpu_custom_call.1']
  #allocation4 [shape = 'u8[512]{0}', space=smem, size = 0x200, scoped, tag = 'prefetched SMEM operand 0']
  #allocation5 [shape = 'u8[512]{0}', space=smem, size = 0x200, scoped, tag = 'prefetched SMEM operand 1']
  %s0 = inlined_call_operand.vmem [shape: s32[2], index: 0, kind: input, shape index: {}]
  %s1 = inlined_call_operand.vmem [shape: s32[2], index: 1, kind: input, shape index: {}]
  %s2 = inlined_call_operand.vmem [shape: s32[24,1], index: 2, kind: input, shape index: {}]
  %s3 = inlined_call_operand.vmem [shape: s32[24,1], index: 3, kind: input, shape index: {}]
  %s4 = inlined_call_operand.vmem [shape: s32[24,1], index: 4, kind: input, shape index: {}]
  %s5 = inlined_call_operand.vmem [shape: f32[24,8], index: 5, kind: input, shape index: {}]
  %s6 = inlined_call_operand.hbm [shape: f32[2,8,256], index: 6, kind: output, shape index: {}]
  %s7 = sld [smem:[#allocation0]]
  $region61: #{tpu_custom_call.1} parent=0
    _
  %s9 = ssub.s32 1, %s7
  %s10 = scalar_select 0, %s9, %s7
  %s11 = sshll.u32 %s0, 4
  %s12 = int_to_ptr.vmem [resolvable:$true] %s11
  %14 = dma.vmem_to_smem %s12, 16, [#allocation4], [#allocation3]
  %s15 = sshll.u32 %s1, 4
  %s16 = int_to_ptr.vmem [resolvable:$true] %s15
  %18 = dma.vmem_to_smem %s16, 16, [#allocation5], [#allocation3]
  %19 = dma.done [#allocation3], 32
  %20 = sfence
  $region1: #{tpu_custom_call.1} parent=0
    #allocation6 [shape = 'u8[16384]{0}', space=vmem, size = 0x4000, scoped, tag = 'output window, operand 0']
    #allocation7 [shape = 's32[2]{0}', space=sflag, size = 0x8, scoped, tag = 'scoped memory for tpu_custom_call.1']
    %21 = vsyncpa [#allocation7], 0
    %s22 = scalar_lea.sflag [#allocation7], 1
    %23 = vsyncpa %s22, 0
    loop: start=0, step=1, limit=4
    $region2: #{tpu_custom_call.1} parent=1 // loop_pre_header
      _
    $region3: #{tpu_custom_call.1} parent=1 // loop_header
      %s25 = sphi 0, %s29
      %p26 = scmp.ge.s32.totalorder %s25, 4
      %s32 = sphi 0, %s51
      %s33 = sphi 0, %s47
      %s34 = sphi 0, %s43
      %s35 = sphi 0, %s32
      %s36 = sphi 0, %s33
      %s37 = sphi 0, %s34
      %s38 = sphi 0, %s35
      %s39 = sphi 0, %s36
      %s40 = sphi 0, %s37
      %s62 = sphi 0, %s64
      %s65 = sphi 0, %s62
      %s66 = sphi 0, %s65
      %s82 = sphi 0, %s66
      %s96 = sphi 0, %s98
      %s99 = sphi 0, %s96
      %s100 = sphi 0, %s99
      %s116 = sphi 0, %s100
      %s130 = sphi 0, %s132
      %s133 = sphi 0, %s130
      %s134 = sphi 0, %s133
      %s150 = sphi 0, %s134
      %s164 = sphi 0, %s166
      %s167 = sphi 0, %s164
      %s168 = sphi 0, %s167
      %s184 = sphi 0, %s168
      %s192 = sphi 0, %s194
      %s195 = sphi 0, %s192
      %s196 = sphi 0, %s195
      %s212 = sphi 0, %s196
    $region4: #{tpu_custom_call.1} parent=1 // loop_header_branch
      %28 = sbr.rel (%p26) target = $region8
    $region5: #{tpu_custom_call.1} parent=1 // loop_body
      %s30 = ssub.s32 %s25, 1
      %s31 = ssub.s32 %s25, 2
      %s41 = sadd.s32 1, %s34
      %p42 = scmp.ge.s32.totalorder %s41, 1
      %s43 = scalar_select %p42, 0, %s41
      %s44 = sadd.s32 1, %s33
      %s45 = scalar_select %p42, %s44, %s33
      %p46 = scmp.ge.s32.totalorder %s45, 1
      %s47 = scalar_select %p46, 0, %s45
      %s48 = sadd.s32 1, %s32
      %s49 = scalar_select %p46, %s48, %s32
      %p50 = scmp.ge.s32.totalorder %s49, 2
      %s51 = scalar_select %p50, 0, %s49
      %s52 = sld [smem:[#allocation4 + %s32]]
      %s53 = sadd.s32 %s52, %s34
      %p54 = scmp.lt.s32.totalorder %s53, 0
      %s55 = scalar_select %p54, %s53, 0
      %s56 = sld [smem:[#allocation4 + %s51]]
      %s57 = sadd.s32 %s56, %s43
      %p58 = scmp.lt.s32.totalorder %s57, 0
      %s59 = scalar_select %p58, %s57, 0
      %s60 = ssub.s32 %s55, %s59
      %p61 = scmp.eq.s32.totalorder %s60, 0
      %s63 = sadd.s32 %s62, 1
      %s64 = scalar_select %p61, %s62, %s63
      %p67 = pneg %p61
      %p68 = scmp.eq.s32.totalorder %s25, 1
      %p69 = por %p67, %p68
      %p70 = scmp.ne.s32.totalorder %s62, %s65
      %p71 = scmp.eq.s32.totalorder %s25, 0
      %p72 = por %p70, %p71
      %p73 = scmp.ne.s32.totalorder %s62, %s65
      %p74 = scmp.eq.s32.totalorder %s30, 1
      %p75 = por %p73, %p74
      %p76 = scmp.ne.s32.totalorder %s65, %s66
      %p77 = scmp.eq.s32.totalorder %s30, 0
      %p78 = por %p76, %p77
      %p79 = scmp.ne.s32.totalorder %s65, %s66
      %p80 = scmp.eq.s32.totalorder %s31, 1
      %p81 = por %p79, %p80
      %p83 = scmp.ne.s32.totalorder %s66, %s82
      %p84 = scmp.eq.s32.totalorder %s31, 0
      %p85 = por %p83, %p84
      %s86 = sld [smem:[#allocation4 + %s32]]
      %s87 = sadd.s32 %s86, %s34
      %p88 = scmp.lt.s32.totalorder %s87, 0
      %s89 = scalar_select %p88, %s87, 0
      %s90 = sld [smem:[#allocation4 + %s51]]
      %s91 = sadd.s32 %s90, %s43
      %p92 = scmp.lt.s32.totalorder %s91, 0
      %s93 = scalar_select %p92, %s91, 0
      %s94 = ssub.s32 %s89, %s93
      %p95 = scmp.eq.s32.totalorder %s94, 0
      %s97 = sadd.s32 %s96, 1
      %s98 = scalar_select %p95, %s96, %s97
      %p101 = pneg %p95
      %p102 = scmp.eq.s32.totalorder %s25, 1
      %p103 = por %p101, %p102
      %p104 = scmp.ne.s32.totalorder %s96, %s99
      %p105 = scmp.eq.s32.totalorder %s25, 0
      %p106 = por %p104, %p105
      %p107 = scmp.ne.s32.totalorder %s96, %s99
      %p108 = scmp.eq.s32.totalorder %s30, 1
      %p109 = por %p107, %p108
      %p110 = scmp.ne.s32.totalorder %s99, %s100
      %p111 = scmp.eq.s32.totalorder %s30, 0
      %p112 = por %p110, %p111
      %p113 = scmp.ne.s32.totalorder %s99, %s100
      %p114 = scmp.eq.s32.totalorder %s31, 1
      %p115 = por %p113, %p114
      %p117 = scmp.ne.s32.totalorder %s100, %s116
      %p118 = scmp.eq.s32.totalorder %s31, 0
      %p119 = por %p117, %p118
      %s120 = sld [smem:[#allocation4 + %s32]]
      %s121 = sadd.s32 %s120, %s34
      %p122 = scmp.lt.s32.totalorder %s121, 0
      %s123 = scalar_select %p122, %s121, 0
      %s124 = sld [smem:[#allocation4 + %s51]]
      %s125 = sadd.s32 %s124, %s43
      %p126 = scmp.lt.s32.totalorder %s125, 0
      %s127 = scalar_select %p126, %s125, 0
      %s128 = ssub.s32 %s123, %s127
      %p129 = scmp.eq.s32.totalorder %s128, 0
      %s131 = sadd.s32 %s130, 1
      %s132 = scalar_select %p129, %s130, %s131
      %p135 = pneg %p129
      %p136 = scmp.eq.s32.totalorder %s25, 1
      %p137 = por %p135, %p136
      %p138 = scmp.ne.s32.totalorder %s130, %s133
      %p139 = scmp.eq.s32.totalorder %s25, 0
      %p140 = por %p138, %p139
      %p141 = scmp.ne.s32.totalorder %s130, %s133
      %p142 = scmp.eq.s32.totalorder %s30, 1
      %p143 = por %p141, %p142
      %p144 = scmp.ne.s32.totalorder %s133, %s134
      %p145 = scmp.eq.s32.totalorder %s30, 0
      %p146 = por %p144, %p145
      %p147 = scmp.ne.s32.totalorder %s133, %s134
      %p148 = scmp.eq.s32.totalorder %s31, 1
      %p149 = por %p147, %p148
      %p151 = scmp.ne.s32.totalorder %s134, %s150
      %p152 = scmp.eq.s32.totalorder %s31, 0
      %p153 = por %p151, %p152
      %s154 = sld [smem:[#allocation4 + %s32]]
      %s155 = sadd.s32 %s154, %s34
      %p156 = scmp.lt.s32.totalorder %s155, 0
      %s157 = scalar_select %p156, %s155, 0
      %s158 = sld [smem:[#allocation4 + %s51]]
      %s159 = sadd.s32 %s158, %s43
      %p160 = scmp.lt.s32.totalorder %s159, 0
      %s161 = scalar_select %p160, %s159, 0
      %s162 = ssub.s32 %s157, %s161
      %p163 = scmp.eq.s32.totalorder %s162, 0
      %s165 = sadd.s32 %s164, 1
      %s166 = scalar_select %p163, %s164, %s165
      %p169 = pneg %p163
      %p170 = scmp.eq.s32.totalorder %s25, 1
      %p171 = por %p169, %p170
      %p172 = scmp.ne.s32.totalorder %s164, %s167
      %p173 = scmp.eq.s32.totalorder %s25, 0
      %p174 = por %p172, %p173
      %p175 = scmp.ne.s32.totalorder %s164, %s167
      %p176 = scmp.eq.s32.totalorder %s30, 1
      %p177 = por %p175, %p176
      %p178 = scmp.ne.s32.totalorder %s167, %s168
      %p179 = scmp.eq.s32.totalorder %s30, 0
      %p180 = por %p178, %p179
      %p181 = scmp.ne.s32.totalorder %s167, %s168
      %p182 = scmp.eq.s32.totalorder %s31, 1
      %p183 = por %p181, %p182
      %p185 = scmp.ne.s32.totalorder %s168, %s184
      %p186 = scmp.eq.s32.totalorder %s31, 0
      %p187 = por %p185, %p186
      %s188 = ssub.s32 %s32, %s51
      %s189 = ssub.s32 %s33, %s47
      %s190 = sor.u32 %s188, %s189
      %p191 = scmp.eq.s32.totalorder %s190, 0
      %s193 = sadd.s32 %s192, 1
      %s194 = scalar_select %p191, %s192, %s193
      %p197 = pneg %p191
      %p198 = scmp.eq.s32.totalorder %s25, 1
      %p199 = por %p197, %p198
      %p200 = scmp.ne.s32.totalorder %s192, %s195
      %p201 = scmp.eq.s32.totalorder %s25, 0
      %p202 = por %p200, %p201
      %p203 = scmp.ne.s32.totalorder %s192, %s195
      %p204 = scmp.eq.s32.totalorder %s30, 1
      %p205 = por %p203, %p204
      %p206 = scmp.ne.s32.totalorder %s195, %s196
      %p207 = scmp.eq.s32.totalorder %s30, 0
      %p208 = por %p206, %p207
      %p209 = scmp.ne.s32.totalorder %s195, %s196
      %p210 = scmp.eq.s32.totalorder %s31, 1
      %p211 = por %p209, %p210
      %p213 = scmp.ne.s32.totalorder %s196, %s212
      %p214 = scmp.eq.s32.totalorder %s31, 0
      %p215 = por %p213, %p214
      %p216 = scmp.le.s32.totalorder 1, %s25
      %p217 = scmp.lt.s32.totalorder %s25, 3
      %p218 = pnand %p216, %p217
      %p219 = pneg %p218
      // Predicated region
      $region9: #{tpu_custom_call.1} parent=5 // pred_check
        _
      $region10: #{tpu_custom_call.1} parent=5 // pred_check_branch
        %221 = sbr.rel (%p218) target = $region12
      $region11: #{tpu_custom_call.1} parent=5 // pred_region
        %s222 = ssub.s32 %s25, 1
      $region12: #{tpu_custom_call.1} parent=5 // pred_fallthru
        _
      %p223 = scmp.lt.s32.totalorder %s25, 2
      // Predicated region
      $region13: #{tpu_custom_call.1} parent=5 // pred_check
        %p224 = pneg %p223
      $region14: #{tpu_custom_call.1} parent=5 // pred_check_branch
        %226 = sbr.rel (%p224) target = $region16
      $region15: #{tpu_custom_call.1} parent=5 // pred_region
        // Predicated region
        $region17: #{tpu_custom_call.1} parent=15 // pred_check
          %p227 = pneg %p72
        $region18: #{tpu_custom_call.1} parent=15 // pred_check_branch
          %229 = sbr.rel (%p227) target = $region20
        $region19: #{tpu_custom_call.1} parent=15 // pred_region
          %s230 = sld [smem:[#allocation4 + %s32]]
          %s231 = sadd.s32 %s230, %s34
          %p232 = scmp.lt.s32.totalorder %s231, 0
          %s233 = scalar_select %p232, %s231, 0
          %s234 = smul.u32 3, %s233
          %p235 = scmp.lt.s32.totalorder %s234, 2
          %s236 = scalar_select %p235, %s234, 2
          %s237 = smul.addr %s236, 8
          %s238 = scalar_lea.vmem %s2, %s237
          %s239 = sld [smem:[#allocation4 + %s32]]
          %s240 = sadd.s32 %s239, %s34
          %p241 = scmp.lt.s32.totalorder %s240, 0
          %s242 = scalar_select %p241, %s240, 0
          %s243 = smul.u32 3, %s242
        $region20: #{tpu_custom_call.1} parent=15 // pred_fallthru
          _
        // Predicated region
        $region21: #{tpu_custom_call.1} parent=15 // pred_check
          %p244 = pneg %p106
        $region22: #{tpu_custom_call.1} parent=15 // pred_check_branch
          %246 = sbr.rel (%p244) target = $region24
        $region23: #{tpu_custom_call.1} parent=15 // pred_region
          %s247 = sld [smem:[#allocation4 + %s32]]
          %s248 = sadd.s32 %s247, %s34
          %p249 = scmp.lt.s32.totalorder %s248, 0
          %s250 = scalar_select %p249, %s248, 0
          %s251 = smul.u32 3, %s250
          %p252 = scmp.lt.s32.totalorder %s251, 2
          %s253 = scalar_select %p252, %s251, 2
          %s254 = smul.addr %s253, 8
          %s255 = scalar_lea.vmem %s3, %s254
          %s256 = sld [smem:[#allocation4 + %s32]]
          %s257 = sadd.s32 %s256, %s34
          %p258 = scmp.lt.s32.totalorder %s257, 0
          %s259 = scalar_select %p258, %s257, 0
          %s260 = smul.u32 3, %s259
        $region24: #{tpu_custom_call.1} parent=15 // pred_fallthru
          _
        // Predicated region
        $region25: #{tpu_custom_call.1} parent=15 // pred_check
          %p261 = pneg %p140
        $region26: #{tpu_custom_call.1} parent=15 // pred_check_branch
          %263 = sbr.rel (%p261) target = $region28
        $region27: #{tpu_custom_call.1} parent=15 // pred_region
          %s264 = sld [smem:[#allocation4 + %s32]]
          %s265 = sadd.s32 %s264, %s34
          %p266 = scmp.lt.s32.totalorder %s265, 0
          %s267 = scalar_select %p266, %s265, 0
          %s268 = smul.u32 3, %s267
          %p269 = scmp.lt.s32.totalorder %s268, 2
          %s270 = scalar_select %p269, %s268, 2
          %s271 = smul.addr %s270, 8
          %s272 = scalar_lea.vmem %s4, %s271
          %s273 = sld [smem:[#allocation4 + %s32]]
          %s274 = sadd.s32 %s273, %s34
          %p275 = scmp.lt.s32.totalorder %s274, 0
          %s276 = scalar_select %p275, %s274, 0
          %s277 = smul.u32 3, %s276
        $region28: #{tpu_custom_call.1} parent=15 // pred_fallthru
          _
        // Predicated region
        $region29: #{tpu_custom_call.1} parent=15 // pred_check
          %p278 = pneg %p174
        $region30: #{tpu_custom_call.1} parent=15 // pred_check_branch
          %280 = sbr.rel (%p278) target = $region32
        $region31: #{tpu_custom_call.1} parent=15 // pred_region
          %s281 = sld [smem:[#allocation4 + %s32]]
          %s282 = sadd.s32 %s281, %s34
          %p283 = scmp.lt.s32.totalorder %s282, 0
          %s284 = scalar_select %p283, %s282, 0
          %s285 = smul.u32 3, %s284
          %p286 = scmp.lt.s32.totalorder %s285, 2
          %s287 = scalar_select %p286, %s285, 2
          %s288 = smul.addr %s287, 8
          %s289 = scalar_lea.vmem %s5, %s288
          %s290 = sld [smem:[#allocation4 + %s32]]
          %s291 = sadd.s32 %s290, %s34
          %p292 = scmp.lt.s32.totalorder %s291, 0
          %s293 = scalar_select %p292, %s291, 0
          %s294 = smul.u32 3, %s293
        $region32: #{tpu_custom_call.1} parent=15 // pred_fallthru
          _
      $region16: #{tpu_custom_call.1} parent=5 // pred_fallthru
        _
      %p295 = scmp.le.s32.totalorder 1, %s25
      %p296 = scmp.lt.s32.totalorder %s25, 3
      %p297 = pnand %p295, %p296
      %p298 = pneg %p297
      // Predicated region
      $region33: #{tpu_custom_call.1} parent=5 // pred_check
        _
      $region34: #{tpu_custom_call.1} parent=5 // pred_check_branch
        %300 = sbr.rel (%p297) target = $region36
      $region35: #{tpu_custom_call.1} parent=5 // pred_region
        %s301 = ssub.s32 %s25, 1
        %s302 = sld [smem:[#allocation4 + %s35]]
        %s303 = sadd.s32 %s302, %s37
        %p304 = scmp.lt.s32.totalorder %s303, 0
        %s305 = scalar_select %p304, %s303, 0
        %s306 = smul.u32 3, %s305
        %p307 = scmp.lt.s32.totalorder %s306, 2
        %s308 = scalar_select %p307, %s306, 2
        %s309 = smul.addr %s308, 8
        %s310 = scalar_lea.vmem %s2, %s309
        %p311 = pneg %p78
        %p312 = pneg %p75
        %s313 = sld [smem:[#allocation4 + %s35]]
        %s314 = sadd.s32 %s313, %s37
        %p315 = scmp.lt.s32.totalorder %s314, 0
        %s316 = scalar_select %p315, %s314, 0
        %s317 = smul.u32 3, %s316
        %p318 = scmp.lt.s32.totalorder %s317, 2
        %s319 = scalar_select %p318, %s317, 2
        %s320 = smul.addr %s319, 8
        %s321 = scalar_lea.vmem %s3, %s320
        %p322 = pneg %p112
        %p323 = pneg %p109
        %s324 = sld [smem:[#allocation4 + %s35]]
        %s325 = sadd.s32 %s324, %s37
        %p326 = scmp.lt.s32.totalorder %s325, 0
        %s327 = scalar_select %p326, %s325, 0
        %s328 = smul.u32 3, %s327
        %p329 = scmp.lt.s32.totalorder %s328, 2
        %s330 = scalar_select %p329, %s328, 2
        %s331 = smul.addr %s330, 8
        %s332 = scalar_lea.vmem %s4, %s331
        %p333 = pneg %p146
        %p334 = pneg %p143
        %s335 = sld [smem:[#allocation4 + %s35]]
        %s336 = sadd.s32 %s335, %s37
        %p337 = scmp.lt.s32.totalorder %s336, 0
        %s338 = scalar_select %p337, %s336, 0
        %s339 = smul.u32 3, %s338
        %p340 = scmp.lt.s32.totalorder %s339, 2
        %s341 = scalar_select %p340, %s339, 2
        %s342 = smul.addr %s341, 8
        %s343 = scalar_lea.vmem %s5, %s342
        %p344 = pneg %p180
        %p345 = pneg %p177
        %p346 = pneg %p208
        %p347 = pneg %p205
        %s348 = sand.u32 %s195, 1
        %s349 = scalar_lea.sflag [#allocation7], %s348
        %s350 = sand.u32 %s195, 1
        %s351 = smul.addr %s350, 16
        %s352 = scalar_lea.vmem [#allocation6], %s351
        %s353 = sld [smem:[#allocation4 + %s35]]
        %s354 = sadd.s32 %s353, %s37
        %p355 = scmp.lt.s32.totalorder %s354, 0
        %s356 = scalar_select %p355, %s354, 0
        %s357 = smul.u32 3, %s356
        %p358 = scmp.lt.s32.totalorder %s357, 2
        %s359 = scalar_select %p358, %s357, 2
        %s360 = smul.addr %s359, 8
        %s361 = scalar_lea.vmem %s2, %s360
        %s362 = sld [smem:[#allocation4 + %s35]]
        %s363 = sadd.s32 %s362, %s37
        %p364 = scmp.lt.s32.totalorder %s363, 0
        %s365 = scalar_select %p364, %s363, 0
        %s366 = smul.u32 3, %s365
        %s367 = sld [smem:[#allocation4 + %s35]]
        %s368 = sadd.s32 %s367, %s37
        %p369 = scmp.lt.s32.totalorder %s368, 0
        %s370 = scalar_select %p369, %s368, 0
        %s371 = smul.u32 3, %s370
        %p372 = scmp.lt.s32.totalorder %s371, 2
        %s373 = scalar_select %p372, %s371, 2
        %s374 = smul.addr %s373, 8
        %s375 = scalar_lea.vmem %s3, %s374
        %s376 = sld [smem:[#allocation4 + %s35]]
        %s377 = sadd.s32 %s376, %s37
        %p378 = scmp.lt.s32.totalorder %s377, 0
        %s379 = scalar_select %p378, %s377, 0
        %s380 = smul.u32 3, %s379
        %s381 = sld [smem:[#allocation4 + %s35]]
        %s382 = sadd.s32 %s381, %s37
        %p383 = scmp.lt.s32.totalorder %s382, 0
        %s384 = scalar_select %p383, %s382, 0
        %s385 = smul.u32 3, %s384
        %p386 = scmp.lt.s32.totalorder %s385, 2
        %s387 = scalar_select %p386, %s385, 2
        %s388 = smul.addr %s387, 8
        %s389 = scalar_lea.vmem %s4, %s388
        %s390 = sld [smem:[#allocation4 + %s35]]
        %s391 = sadd.s32 %s390, %s37
        %p392 = scmp.lt.s32.totalorder %s391, 0
        %s393 = scalar_select %p392, %s391, 0
        %s394 = smul.u32 3, %s393
        %s395 = sld [smem:[#allocation4 + %s35]]
        %s396 = sadd.s32 %s395, %s37
        %p397 = scmp.lt.s32.totalorder %s396, 0
        %s398 = scalar_select %p397, %s396, 0
        %s399 = smul.u32 3, %s398
        %p400 = scmp.lt.s32.totalorder %s399, 2
        %s401 = scalar_select %p400, %s399, 2
        %s402 = smul.addr %s401, 8
        %s403 = scalar_lea.vmem %s5, %s402
        %s404 = sld [smem:[#allocation4 + %s35]]
        %s405 = sadd.s32 %s404, %s37
        %p406 = scmp.lt.s32.totalorder %s405, 0
        %s407 = scalar_select %p406, %s405, 0
        %s408 = smul.u32 3, %s407
        %s409 = smul.u32 2, %s36
        %p410 = scmp.eq.s32.totalorder %s37, 0
        // Predicated region
        $region37: #{tpu_custom_call.1} parent=35 // pred_check
          %p411 = pneg %p410
        $region38: #{tpu_custom_call.1} parent=35 // pred_check_branch
          %413 = sbr.rel (%p411) target = $region40
        $region39: #{tpu_custom_call.1} parent=35 // pred_region
          %414 = vst [vmem:[#allocation2] sm:$0xff] 0.0
          %415 = vst [vmem:[#allocation2 + $0x8] sm:$0xff] 0.0
        $region40: #{tpu_custom_call.1} parent=35 // pred_fallthru
          _
        %s416 = sld [smem:[#allocation5 + %s35]]
        %p417 = scmp.lt.s32.totalorder %s37, %s416
        // Predicated region
        $region41: #{tpu_custom_call.1} parent=35 // pred_check
          %p418 = pneg %p417
        $region42: #{tpu_custom_call.1} parent=35 // pred_check_branch
          %420 = sbr.rel (%p418) target = $region44
        $region43: #{tpu_custom_call.1} parent=35 // pred_region
          %v421 = vlaneseq
          %v422 = vand.u32 %v421, 127
          %v423 = vadd.s32 %v422, 128
          %s424 = smul.u32 %s36, 256
          %v425 = vstv %s424
          %v426 = vadd.s32 %v422, %v425
          %v427 = vadd.s32 %v423, %v425
          %v428 = vld [vmem:[%s375] sm:$0xff]
          %v429 = vld [vmem:[%s375 + $0x8] sm:$0xff]
          %v430 = vld [vmem:[%s375 + $0x10] sm:$0xff]
          %431 = vset.pattern.permute.xlu0 0
          %432 = vperm.xlu0 %431, %v428
          %v433 = vpop.permute.xlu0 %432
          %434 = vset.pattern.permute.xlu0 0
          %435 = vperm.xlu0 %434, %v429
          %v436 = vpop.permute.xlu0 %435
          %437 = vset.pattern.permute.xlu0 0
          %438 = vperm.xlu0 %437, %v430
          %v439 = vpop.permute.xlu0 %438
          %vm440 = vcmp.eq.s32.totalorder %v433, %v426
          %vm441 = vcmp.eq.s32.totalorder %v433, %v427
          %vm442 = vcmp.eq.s32.totalorder %v436, %v426
          %vm443 = vcmp.eq.s32.totalorder %v436, %v427
          %vm444 = vcmp.eq.s32.totalorder %v439, %v426
          %vm445 = vcmp.eq.s32.totalorder %v439, %v427
          %v446 = vld [vmem:[%s361] sm:$0xff]
          %v447 = vld [vmem:[%s361 + $0x8] sm:$0xff]
          %v448 = vld [vmem:[%s361 + $0x10] sm:$0xff]
          %v449 = vstv %s35
          %vm450 = vcmp.eq.s32.totalorder %v446, %v449
          %vm451 = vcmp.eq.s32.totalorder %v447, %v449
          %vm452 = vcmp.eq.s32.totalorder %v448, %v449
          %v453 = vsel %vm450, 1, 0
          %v454 = vsel %vm451, 1, 0
          %v455 = vsel %vm452, 1, 0
          %456 = vset.pattern.permute.xlu0 0
          %457 = vperm.xlu0 %456, %v453
          %v458 = vpop.permute.xlu0 %457
          %459 = vset.pattern.permute.xlu0 0
          %460 = vperm.xlu0 %459, %v454
          %v461 = vpop.permute.xlu0 %460
          %462 = vset.pattern.permute.xlu0 0
          %463 = vperm.xlu0 %462, %v455
          %v464 = vpop.permute.xlu0 %463
          %vm465 = vcmp.eq.s32.totalorder %v458, 1
          %vm466 = vcmp.eq.s32.totalorder %v461, 1
          %vm467 = vcmp.eq.s32.totalorder %v464, 1
          %vm468 = vmand %vm440, %vm465
          %vm469 = vmand %vm441, %vm465
          %vm470 = vmand %vm442, %vm466
          %vm471 = vmand %vm443, %vm466
          %vm472 = vmand %vm444, %vm467
          %vm473 = vmand %vm445, %vm467
          %v474 = vld [vmem:[%s389] sm:$0xff]
          %v475 = vld [vmem:[%s389 + $0x8] sm:$0xff]
          %v476 = vld [vmem:[%s389 + $0x10] sm:$0xff]
          %vm477 = vcmp.ne.s32.totalorder %v474, 0
          %vm478 = vcmp.ne.s32.totalorder %v475, 0
          %vm479 = vcmp.ne.s32.totalorder %v476, 0
          %v480 = vsel %vm477, 1, 0
          %v481 = vsel %vm478, 1, 0
          %v482 = vsel %vm479, 1, 0
          %483 = vset.pattern.permute.xlu0 0
          %484 = vperm.xlu0 %483, %v480
          %v485 = vpop.permute.xlu0 %484
          %486 = vset.pattern.permute.xlu0 0
          %487 = vperm.xlu0 %486, %v481
          %v488 = vpop.permute.xlu0 %487
          %489 = vset.pattern.permute.xlu0 0
          %490 = vperm.xlu0 %489, %v482
          %v491 = vpop.permute.xlu0 %490
          %vm492 = vcmp.eq.s32.totalorder %v485, 1
          %vm493 = vcmp.eq.s32.totalorder %v488, 1
          %vm494 = vcmp.eq.s32.totalorder %v491, 1
          %vm495 = vmand %vm468, %vm492
          %vm496 = vmand %vm469, %vm492
          %vm497 = vmand %vm470, %vm493
          %vm498 = vmand %vm471, %vm493
          %vm499 = vmand %vm472, %vm494
          %vm500 = vmand %vm473, %vm494
          %v501 = vsel %vm495, 1.0, 0.0
          %v502 = vsel %vm496, 1.0, 0.0
          %v503 = vsel %vm497, 1.0, 0.0
          %v504 = vsel %vm498, 1.0, 0.0
          %v505 = vsel %vm499, 1.0, 0.0
          %v506 = vsel %vm500, 1.0, 0.0
          %v507 = vld [vmem:[#allocation2] sm:$0xff]
          %v508 = vld [vmem:[#allocation2 + $0x8] sm:$0xff]
          %v509 = vld [vmem:[%s403] sm:$0xff]
          %v510 = vld [vmem:[%s403 + $0x8] sm:$0xff]
          %v511 = vld [vmem:[%s403 + $0x10] sm:$0xff]
          %512 = vxpose.xlu0.b32.start [1/16] %v509, 128
          %513 = vxpose.xlu0.b32.cont [2/16] %v510, 128
          %514 = vxpose.xlu0.b32.cont [3/16] %v511, 128
          %515 = vxpose.xlu0.b32.cont [4/16] 0.0, 128
          %516 = vxpose.xlu0.b32.cont [5/16] 0.0, 128
          %517 = vxpose.xlu0.b32.cont [6/16] 0.0, 128
          %518 = vxpose.xlu0.b32.cont [7/16] 0.0, 128
          %519 = vxpose.xlu0.b32.cont [8/16] 0.0, 128
          %520 = vxpose.xlu0.b32.cont [9/16] 0.0, 128
          %521 = vxpose.xlu0.b32.cont [10/16] 0.0, 128
          %522 = vxpose.xlu0.b32.cont [11/16] 0.0, 128
          %523 = vxpose.xlu0.b32.cont [12/16] 0.0, 128
          %524 = vxpose.xlu0.b32.cont [13/16] 0.0, 128
          %525 = vxpose.xlu0.b32.cont [14/16] 0.0, 128
          %526 = vxpose.xlu0.b32.cont [15/16] 0.0, 128
          %527 = vxpose.xlu0.b32.end [16/16] 0.0, 128
          %v528 = vpop.trf.xlu0
          %v529 = vpop.trf.xlu0
          %v530 = vpop.trf.xlu0
          %v531 = vpop.trf.xlu0
          %v532 = vpop.trf.xlu0
          %v533 = vpop.trf.xlu0
          %v534 = vpop.trf.xlu0
          %v535 = vpop.trf.xlu0
          %v536 = vpop.trf.xlu0
          %v537 = vpop.trf.xlu0
          %v538 = vpop.trf.xlu0
          %v539 = vpop.trf.xlu0
          %v540 = vpop.trf.xlu0
          %v541 = vpop.trf.xlu0
          %v542 = vpop.trf.xlu0
          %v543 = vpop.trf.xlu0
          %vm544 = vcmask 195584
          %v546 = vsel %vm544, %v528, 0
          %548 = vmatprep.subr.mxu0 0.0
          %549 = vmatpush1.msra.mxu0 0.0
          %550 = vmatprep.subr.mxu0 0.0
          %551 = vmatpush1.msra.mxu0 0.0
          %552 = vmatprep.subr.mxu0 0.0
          %553 = vmatpush1.msra.mxu0 0.0
          %554 = vmatprep.subr.mxu0 0.0
          %555 = vmatpush1.msra.mxu0 0.0
          %556 = vmatprep.subr.mxu0 0.0
          %557 = vmatpush1.msra.mxu0 0.0
          %558 = vmatprep.subr.mxu0 0.0
          %559 = vmatpush1.msra.mxu0 0.0
          %560 = vmatprep.subr.mxu0 0.0
          %561 = vmatpush1.msra.mxu0 0.0
          %562 = vmatprep.subr.mxu0 0.0
          %563 = vmatpush1.msra.mxu0 0.0
          %564 = vmatprep.subr.mxu0 0.0
          %565 = vmatpush1.msra.mxu0 0.0
          %566 = vmatprep.subr.mxu0 0.0
          %567 = vmatpush1.msra.mxu0 0.0
          %568 = vmatprep.subr.mxu0 0.0
          %569 = vmatpush1.msra.mxu0 0.0
          %570 = vmatprep.subr.mxu0 0.0
          %571 = vmatpush1.msra.mxu0 0.0
          %572 = vmatprep.subr.mxu0 0.0
          %573 = vmatpush1.msra.mxu0 0.0
          %574 = vmatprep.subr.mxu0 %v506
          %575 = vmatpush1.msra.mxu0 %v505
          %576 = vmatprep.subr.mxu0 %v504
          %577 = vmatpush1.msra.mxu0 %v503
          %578 = vmatprep.subr.mxu0 %v502
          %579 = vmatpush1.msra.mxu0 %v501
          %580 = vmatprep.subr.mxu0 0.0
          %581 = vmatpush2.msra.mxu0 0.0
          %582 = vmatprep.subr.mxu0 0.0
          %583 = vmatpush2.msra.mxu0 0.0
          %584 = vmatprep.subr.mxu0 0.0
          %585 = vmatpush2.msra.mxu0 0.0
          %586 = vmatprep.subr.mxu0 0.0
          %587 = vmatpush2.msra.mxu0 0.0
          %588 = vmatprep.subr.mxu0 0.0
          %589 = vmatpush2.msra.mxu0 0.0
          %590 = vmatprep.subr.mxu0 0.0
          %591 = vmatpush2.msra.mxu0 0.0
          %592 = vmatprep.subr.mxu0 0.0
          %593 = vmatpush2.msra.mxu0 0.0
          %594 = vmatprep.subr.mxu0 0.0
          %595 = vmatpush2.msra.mxu0 0.0
          %596 = vmatprep.subr.mxu0 0.0
          %597 = vmatpush2.msra.mxu0 0.0
          %598 = vmatprep.subr.mxu0 0.0
          %599 = vmatpush2.msra.mxu0 0.0
          %600 = vmatprep.subr.mxu0 0.0
          %601 = vmatpush2.msra.mxu0 0.0
          %602 = vmatprep.subr.mxu0 0.0
          %603 = vmatpush2.msra.mxu0 0.0
          %604 = vmatprep.subr.mxu0 0.0
          %605 = vmatpush2.msra.mxu0 0.0
          %606 = vmatprep.subr.mxu0 0.0
          %607 = vmatpush2.msra.mxu0 0.0
          %608 = vmatprep.subr.mxu0 0.0
          %609 = vmatpush2.msra.mxu0 0.0
          %610 = vmatprep.subr.mxu0 0.0
          %611 = vmatpush2.msra.mxu0 0.0
          %612 = vmatprep.mubr.f32.mxu0 0.0
          %613 = vmatmul.mubr.f32.gmra.mxu0 %v546
          %v614 = vpop.f32.mrf.mxu0
          %v615 = vadd.f32 0.0, %v614
          %v616 = vpop.f32.mrf.mxu0
          %v617 = vadd.f32 0.0, %v616
          %618 = vdwg.mxu0
          %v619 = vadd.f32 %v507, %v615
          %v620 = vadd.f32 %v508, %v617
          %621 = vst [vmem:[#allocation2] sm:$0xff] %v619
          %622 = vst [vmem:[#allocation2 + $0x8] sm:$0xff] %v620
        $region44: #{tpu_custom_call.1} parent=35 // pred_fallthru
          _
        // Predicated region
        $region45: #{tpu_custom_call.1} parent=35 // pred_check
          %p623 = pneg %p410
        $region46: #{tpu_custom_call.1} parent=35 // pred_check_branch
          %625 = sbr.rel (%p623) target = $region48
        $region47: #{tpu_custom_call.1} parent=35 // pred_region
          %v626 = vld [vmem:[#allocation2] sm:$0xff]
          %v627 = vld [vmem:[#allocation2 + $0x8] sm:$0xff]
          %628 = vst [vmem:[%s352] sm:$0xff] %v626
          %629 = vst [vmem:[%s352 + $0x8] sm:$0xff] %v627
        $region48: #{tpu_custom_call.1} parent=35 // pred_fallthru
          _
        %s630 = sand.u32 %s195, 1
        %s631 = scalar_lea.sflag [#allocation7], %s630
        %s632 = sand.u32 %s195, 1
        %s633 = smul.addr %s632, 16
        %s634 = scalar_lea.vmem [#allocation6], %s633
        // Predicated region
        $region49: #{tpu_custom_call.1} parent=35 // pred_check
          %p635 = pneg %p205
        $region50: #{tpu_custom_call.1} parent=35 // pred_check_branch
          %637 = sbr.rel (%p635) target = $region52
        $region51: #{tpu_custom_call.1} parent=35 // pred_region
          %s638 = smul.u32 2, %s36
          %s640 = ssub.s32 256, 256
          %641 = vsyncadd %s631, %s640
          %s642 = smul.addr %s35, 2
          %s643 = sadd.s32 %s638, %s642
          %s644 = smul.addr %s643, 128
          %s645 = scalar_lea.hbm %s6, %s644
          %s647 = sshll.u32 %s634, 4
          %s648 = int_to_ptr.vmem [resolvable:$true] %s647
          %650 = dma.vmem_to_hbm [thread:$0]  %s648, 256, %s645, %s631
        $region52: #{tpu_custom_call.1} parent=35 // pred_fallthru
          _
      $region36: #{tpu_custom_call.1} parent=5 // pred_fallthru
        _
      %p651 = scmp.le.s32.totalorder 2, %s25
      // Predicated region
      $region53: #{tpu_custom_call.1} parent=5 // pred_check
        %p652 = pneg %p651
      $region54: #{tpu_custom_call.1} parent=5 // pred_check_branch
        %654 = sbr.rel (%p652) target = $region56
      $region55: #{tpu_custom_call.1} parent=5 // pred_region
        %s655 = ssub.s32 %s25, 2
        // Predicated region
        $region57: #{tpu_custom_call.1} parent=55 // pred_check
          %p656 = pneg %p211
        $region58: #{tpu_custom_call.1} parent=55 // pred_check_branch
          %658 = sbr.rel (%p656) target = $region60
        $region59: #{tpu_custom_call.1} parent=55 // pred_region
          %s659 = sand.u32 %s196, 1
          %s660 = scalar_lea.sflag [#allocation7], %s659
          %s661 = sand.u32 %s196, 1
          %s662 = smul.addr %s661, 16
          %s663 = scalar_lea.vmem [#allocation6], %s662
          %664 = dma.done %s660, 256
        $region60: #{tpu_custom_call.1} parent=55 // pred_fallthru
          _
      $region56: #{tpu_custom_call.1} parent=5 // pred_fallthru
        _
    $region6: #{tpu_custom_call.1} parent=1 // loop_footer
      %s29 = sadd.s32 1, %s25
    $region7: #{tpu_custom_call.1} parent=1 // loop_footer_branch
      %24 = sbr.rel target = $region3
    $region8: #{tpu_custom_call.1} parent=1 // loop_exit
      _
    %665 = vsyncpa [#allocation7], 1
    %s666 = scalar_lea.sflag [#allocation7], 1
    %667 = vsyncpa %s666, 1

</llo_original>
